<compile_context>
chip_gen: v6e
topology: v6e:2x2x1
jax: 0.10.0
libtpu: 0.0.40
codegen_flags: <defaults>
</compile_context>

<pallas_src>
import functools

import jax
import jax.numpy as jnp
from jax.experimental import pallas as pl
from jax.experimental.pallas import tpu as pltpu


# ---------------------------------------------------------------------------
# VMEM budgeting
# ---------------------------------------------------------------------------

@functools.lru_cache(maxsize=None)
def _vmem_limits():
    """Returns (vmem_limit_bytes for CompilerParams, block-sizing budget)."""
    try:
        phys = int(pltpu.get_tpu_info().vmem_capacity_bytes)
    except Exception:
        phys = 64 << 20  # conservative fallback: v7x has 64 MiB per TensorCore
    limit = min(phys * 3 // 4, 96 << 20)   # scoped limit we request
    budget = int(limit * 0.7)              # headroom for params / compiler scratch
    return limit, budget


def _compiler_params(dimension_semantics, vmem_limit):
    return pltpu.CompilerParams(dimension_semantics=dimension_semantics,
                                vmem_limit_bytes=vmem_limit)


def _pick_b_tile(B, C, HW, streams, itemsize, budget, target_block=1 << 20):
    """Batch block for the fused path: smallest divisor of B whose per-branch
    block reaches ~1 MiB (amortizes grid-step overhead), capped by the VMEM
    budget and by B//2 so the batch axis still shards across both v7x cores."""
    cap = B if B < 2 else max(1, B // 2)
    best = 1
    for bt in range(1, cap + 1):
        if B % bt:
            continue
        if streams * 2 * bt * C * HW * itemsize > budget:
            break
        best = bt
        if bt * C * HW * itemsize >= target_block:
            break
    return best


def _choose_hw_tiling(HW, C, streams, itemsize, budget):
    """(hw_tile, padded_HW) for the tiled two-pass path.

    hw_tile is capped so the pass-2 working set (streams x double-buffered
    blocks) stays inside `budget` and so a single branch block stays <= 4 MiB
    (past which the HBM roofline is already saturated)."""
    per_lane = C * itemsize
    max_tile = min(budget // (streams * 2 * per_lane), (4 << 20) // per_lane)
    max_tile = max(128, (max_tile // 128) * 128)
    if HW <= max_tile:
        return HW, HW
    best = 0
    for t in range(max_tile, 127, -128):
        if HW % t == 0:
            best = t
            break
    if best >= min(max_tile, 256):
        return best, HW
    # No usable multiple-of-128 divisor (or only a tiny one): zero-pad HW.
    t = min(max_tile, 2048)
    return t, pl.cdiv(HW, t) * t


# ---------------------------------------------------------------------------
# Kernels
# ---------------------------------------------------------------------------

def _make_fused_kernel(height, inv_hw):
    """Single pass: reads each branch once, writes V once."""
    def kernel(*refs):
        x_refs = refs[:height]
        w1_ref, a_ref, w2_ref, o_ref = refs[height:height + 4]

        # U = sum_i x_i, reduced over the lane (spatial) axis -> GAP.
        u = x_refs[0][...].astype(jnp.float32)                     # (bt, C, HW)
        for i in range(1, height):
            u = u + x_refs[i][...].astype(jnp.float32)
        s = jnp.sum(u, axis=-1, keepdims=True) * inv_hw            # (bt, C, 1)

        # conv_du: 1x1 conv C -> d (no bias): z[b, j] = sum_c w1[c, j] * s[b, c]
        z = jnp.sum(s * w1_ref[...][None], axis=1, keepdims=True)  # (bt, 1, d)
        a = a_ref[0, 0]                                            # PReLU slope
        z = jnp.maximum(z, 0.0) + a * jnp.minimum(z, 0.0)

        # fcs[i]: 1x1 conv d -> C, then softmax over branches.
        logits = [jnp.sum(w2_ref[i][None] * z, axis=-1, keepdims=True)
                  for i in range(height)]                          # (bt, C, 1)
        m = logits[0]
        for i in range(1, height):
            m = jnp.maximum(m, logits[i])
        exps = [jnp.exp(l - m) for l in logits]
        denom = exps[0]
        for i in range(1, height):
            denom = denom + exps[i]
        inv = pl.reciprocal(denom, approx=False)

        # V = sum_i x_i * att_i (att_i is (bt, C, 1), lane-broadcast).
        acc = x_refs[0][...].astype(jnp.float32) * (exps[0] * inv)
        for i in range(1, height):
            acc = acc + x_refs[i][...].astype(jnp.float32) * (exps[i] * inv)
        o_ref[...] = acc.astype(o_ref.dtype)

    return kernel


def _make_attn_kernel(height, inv_hw):
    """Two-pass path, pass 1: streaming GAP -> conv_du -> PReLU -> fcs -> softmax."""
    def kernel(*refs):
        x_refs = refs[:height]
        w1_ref, a_ref, w2_ref, att_ref, ssum_ref = refs[height:]

        t = pl.program_id(1)
        nt = pl.num_programs(1)

        @pl.when(t == 0)
        def _():
            ssum_ref[...] = jnp.zeros_like(ssum_ref)

        # feats_U for this spatial tile (never materialized in HBM), reduced
        # over the lane (spatial) axis into the per-channel running sum.
        u = x_refs[0][0].astype(jnp.float32)                       # (C, hw_tile)
        for i in range(1, height):
            u = u + x_refs[i][0].astype(jnp.float32)
        ssum_ref[...] += jnp.sum(u, axis=-1, keepdims=True)        # (C, 1)

        @pl.when(t == nt - 1)
        def _():
            s = ssum_ref[...] * inv_hw                             # (C, 1) GAP
            z = jnp.sum(w1_ref[...] * s, axis=0, keepdims=True)    # (1, d)
            a = a_ref[0, 0]
            z = jnp.maximum(z, 0.0) + a * jnp.minimum(z, 0.0)      # PReLU
            logits = [jnp.sum(w2_ref[i] * z, axis=-1, keepdims=True)
                      for i in range(height)]                      # (C, 1) each
            m = logits[0]
            for i in range(1, height):
                m = jnp.maximum(m, logits[i])
            exps = [jnp.exp(l - m) for l in logits]
            denom = exps[0]
            for i in range(1, height):
                denom = denom + exps[i]
            inv = pl.reciprocal(denom, approx=False)
            for i in range(height):
                att_ref[0, i] = exps[i] * inv                      # (C, 1)

    return kernel


def _make_apply_kernel(height):
    """Two-pass path, pass 2: streaming weighted sum V = sum_i x_i * att_i."""
    def kernel(*refs):
        att_ref = refs[0]
        x_refs = refs[1:1 + height]
        o_ref = refs[1 + height]
        acc = x_refs[0][0].astype(jnp.float32) * att_ref[0, 0]
        for i in range(1, height):
            acc = acc + x_refs[i][0].astype(jnp.float32) * att_ref[0, i]
        o_ref[0] = acc.astype(o_ref.dtype)

    return kernel


# ---------------------------------------------------------------------------
# Wrapper
# ---------------------------------------------------------------------------

def skff_pallas(inp_feats, w1, prelu_a, w2, *, vmem_budget=None):
    """SKFF forward.

    inp_feats: list of `height` arrays, each NCHW (B, C, H, W)
    w1       : (C, d)          conv_du 1x1 weight, transposed from torch (d, C, 1, 1)
    prelu_a  : (1, 1)          PReLU slope
    w2       : (height, C, d)  fcs[i] 1x1 weights, torch (C, d, 1, 1) squeezed
    vmem_budget: optional override of the block-sizing budget (testing only).
    """
    height = len(inp_feats)
    B, C, H, W = inp_feats[0].shape
    HW = H * W
    d = w1.shape[1]
    dtype = inp_feats[0].dtype
    itemsize = jnp.dtype(dtype).itemsize

    vmem_limit, budget = _vmem_limits()
    if vmem_budget is not None:
        budget = vmem_budget

    # Free reshape: NCHW -> (B, C, HW); spatial on the lane axis (lane-dense).
    xs = [f.reshape(B, C, HW) for f in inp_feats]
    w1f = w1.astype(jnp.float32)
    af = prelu_a.astype(jnp.float32)
    w2f = w2.astype(jnp.float32)

    streams = height + 1   # branch inputs + output (att traffic is negligible)

    # ---- fused single-pass: each branch read from HBM exactly once --------
    if streams * 2 * C * HW * itemsize <= budget:
        b_tile = _pick_b_tile(B, C, HW, streams, itemsize, budget)
        x_spec = pl.BlockSpec((b_tile, C, HW), lambda b: (b, 0, 0))
        out = pl.pallas_call(
            _make_fused_kernel(height, 1.0 / HW),
            out_shape=jax.ShapeDtypeStruct((B, C, HW), dtype),
            grid_spec=pltpu.PrefetchScalarGridSpec(
                num_scalar_prefetch=0,
                grid=(B // b_tile,),
                in_specs=(
                    [x_spec] * height
                    + [pl.BlockSpec((C, d), lambda b: (0, 0)),
                       pl.BlockSpec(memory_space=pltpu.MemorySpace.SMEM),
                       pl.BlockSpec((height, C, d), lambda b: (0, 0, 0))]),
                out_specs=x_spec),
            compiler_params=_compiler_params(("parallel",), vmem_limit),
        )(*xs, w1f, af, w2f)
        return out.reshape(B, C, H, W)

    # ---- two-pass fallback for HW that does not fit VMEM ------------------
    hw_tile, HW_pad = _choose_hw_tiling(HW, C, streams, itemsize, budget)
    if HW_pad != HW:
        # Zero pad-lanes: GAP below still divides by the true HW so the
        # attention weights are unbiased; pad lanes are cropped on output.
        xs = [jnp.pad(x, ((0, 0), (0, 0), (0, HW_pad - HW))) for x in xs]
    nt = HW_pad // hw_tile

    x_spec = pl.BlockSpec((1, C, hw_tile), lambda b, t: (b, 0, t))
    att_spec = pl.BlockSpec((1, height, C, 1), lambda b, t: (b, 0, 0, 0))

    # pass 1: attention (GAP -> conv_du -> PReLU -> fcs -> softmax).
    # TODO(synk): with B == 1 on v7x this pass only shards on the batch axis
    # (one TensorCore idle); splitting the HW reduction across cores with a
    # cross-core combine would recover the read bandwidth.
    att = pl.pallas_call(
        _make_attn_kernel(height, 1.0 / HW),
        out_shape=jax.ShapeDtypeStruct((B, height, C, 1), jnp.float32),
        grid_spec=pltpu.PrefetchScalarGridSpec(
            num_scalar_prefetch=0,
            grid=(B, nt),
            in_specs=(
                [x_spec] * height
                + [pl.BlockSpec((C, d), lambda b, t: (0, 0)),
                   pl.BlockSpec(memory_space=pltpu.MemorySpace.SMEM),
                   pl.BlockSpec((height, C, d), lambda b, t: (0, 0, 0))]),
            out_specs=att_spec,
            scratch_shapes=[pltpu.VMEM((C, 1), jnp.float32)]),
        compiler_params=_compiler_params(("parallel", "arbitrary"), vmem_limit),
    )(*xs, w1f, af, w2f)

    # pass 2: streaming weighted sum V = sum_i x_i * att_i.
    out = pl.pallas_call(
        _make_apply_kernel(height),
        out_shape=jax.ShapeDtypeStruct((B, C, HW_pad), dtype),
        grid_spec=pltpu.PrefetchScalarGridSpec(
            num_scalar_prefetch=0,
            grid=(B, nt),
            in_specs=[att_spec] + [x_spec] * height,
            out_specs=x_spec),
        compiler_params=_compiler_params(("parallel", "parallel"), vmem_limit),
    )(att, *xs)

    if HW_pad != HW:
        out = out[:, :, :HW]
    return out.reshape(B, C, H, W)


# ---------------------------------------------------------------------------
# Pure-JAX reference (matches the PyTorch forward, NCHW)
# ---------------------------------------------------------------------------

def skff_ref(inp_feats, w1, prelu_a, w2):
    x = jnp.stack(inp_feats, axis=1)                # (B, height, C, H, W)
    U = jnp.sum(x, axis=1)                          # (B, C, H, W)
    S = jnp.mean(U, axis=(2, 3))                    # (B, C)
    Z = S @ w1                                      # (B, d)
    a = prelu_a[0, 0]
    Z = jnp.maximum(Z, 0.0) + a * jnp.minimum(Z, 0.0)
    att = jnp.einsum('bd,hcd->bhc', Z, w2)          # (B, height, C)
    att = jax.nn.softmax(att, axis=1)
    V = jnp.sum(x * att[:, :, :, None, None], axis=1)
    return V


if __name__ == "__main__":
    height, reduction = 3, 8

    def make_case(key, B, C, H, W):
        d = max(int(C / reduction), 4)
        keys = jax.random.split(key, 2 + height)
        w1 = 0.1 * jax.random.normal(keys[0], (C, d), dtype=jnp.float32)
        prelu_a = jnp.full((1, 1), 0.25, dtype=jnp.float32)
        w2 = 0.1 * jax.random.normal(keys[1], (height, C, d), dtype=jnp.float32)
        feats = [jax.random.normal(keys[2 + i], (B, C, H, W), dtype=jnp.float32)
                 for i in range(height)]
        return feats, w1, prelu_a, w2

    key = jax.random.PRNGKey(0)
    k1, k2, k3 = jax.random.split(key, 3)

    def check(feats, w1, a, w2, **kw):
        out = jax.block_until_ready(skff_pallas(feats, w1, a, w2, **kw))
        ref = jax.block_until_ready(skff_ref(feats, w1, a, w2))
        assert out.shape == ref.shape
        assert jnp.allclose(out, ref, atol=1e-4, rtol=1e-4), \
            f"max err {jnp.max(jnp.abs(out - ref))}"

    # 1) Fused single-pass path (default VMEM budget).
    feats, w1, a, w2 = make_case(k1, B=2, C=8, H=16, W=16)
    check(feats, w1, a, w2)

    # 2) Two-pass tiled path (forced via a tiny block-sizing budget).
    feats, w1, a, w2 = make_case(k2, B=2, C=8, H=16, W=16)
    check(feats, w1, a, w2, vmem_budget=48 << 10)

    # 3) Two-pass tiled path with spatial padding (HW not divisible by 128).
    feats, w1, a, w2 = make_case(k3, B=2, C=8, H=18, W=18)
    check(feats, w1, a, w2, vmem_budget=48 << 10)

    print("KERNEL_OK")
</pallas_src>

<mosaic_0001>
module attributes {stable_mosaic.version = 11 : i64} {
  func.func @kernel(%arg0: i32, %arg1: memref<1x8x256xf32, #tpu.memory_space<vmem>>, %arg2: memref<1x8x256xf32, #tpu.memory_space<vmem>>, %arg3: memref<1x8x256xf32, #tpu.memory_space<vmem>>, %arg4: memref<8x4xf32, #tpu.memory_space<vmem>>, %arg5: memref<1x1xf32, #tpu.memory_space<smem>>, %arg6: memref<3x8x4xf32, #tpu.memory_space<vmem>>, %arg7: memref<1x8x256xf32, #tpu.memory_space<vmem>>) attributes {dimension_semantics = [#tpu.dimension_semantics<parallel>], iteration_bounds = array<i64: 2>, scalar_prefetch = 0 : i64, scratch_operands = 0 : i64, tpu.core_type = #tpu.core_type<tc>, window_params = [{transform_indices = @transform_0, window_bounds = array<i64: 1, 8, 256>}, {transform_indices = @transform_1, window_bounds = array<i64: 1, 8, 256>}, {transform_indices = @transform_2, window_bounds = array<i64: 1, 8, 256>}, {pipeline_mode = #tpu.pipeline_mode<synchronous>, transform_indices = @transform_3, window_bounds = array<i64: 8, 4>}, {transform_indices = @transform_4, window_bounds = array<i64: 1, 1>}, {pipeline_mode = #tpu.pipeline_mode<synchronous>, transform_indices = @transform_5, window_bounds = array<i64: 3, 8, 4>}, {transform_indices = @transform_6, window_bounds = array<i64: 1, 8, 256>}]} {
    %c0 = arith.constant 0 : index
    %c0_0 = arith.constant 0 : index
    %c0_1 = arith.constant 0 : index
    %0 = vector.load %arg1[%c0, %c0_0, %c0_1] : memref<1x8x256xf32, #tpu.memory_space<vmem>>, vector<1x8x256xf32>
    %c0_2 = arith.constant 0 : index
    %c0_3 = arith.constant 0 : index
    %c0_4 = arith.constant 0 : index
    %1 = vector.load %arg2[%c0_2, %c0_3, %c0_4] : memref<1x8x256xf32, #tpu.memory_space<vmem>>, vector<1x8x256xf32>
    %2 = arith.addf %0, %1 : vector<1x8x256xf32>
    %c0_5 = arith.constant 0 : index
    %c0_6 = arith.constant 0 : index
    %c0_7 = arith.constant 0 : index
    %3 = vector.load %arg3[%c0_5, %c0_6, %c0_7] : memref<1x8x256xf32, #tpu.memory_space<vmem>>, vector<1x8x256xf32>
    %4 = arith.addf %2, %3 : vector<1x8x256xf32>
    %cst = arith.constant dense<0.000000e+00> : vector<1x8xf32>
    %5 = vector.multi_reduction <add>, %4, %cst [2] : vector<1x8x256xf32> to vector<1x8xf32>
    %6 = vector.shape_cast %5 : vector<1x8xf32> to vector<1x8x1xf32>
    %cst_8 = arith.constant 3.906250e-03 : f32
    %7 = vector.broadcast %cst_8 : f32 to vector<1x8x1xf32>
    %8 = arith.mulf %6, %7 : vector<1x8x1xf32>
    %c0_9 = arith.constant 0 : index
    %c0_10 = arith.constant 0 : index
    %9 = vector.load %arg4[%c0_9, %c0_10] : memref<8x4xf32, #tpu.memory_space<vmem>>, vector<8x4xf32>
    %10 = vector.shape_cast %9 : vector<8x4xf32> to vector<1x8x4xf32>
    %11 = vector.broadcast %8 : vector<1x8x1xf32> to vector<1x8x4xf32>
    %12 = arith.mulf %11, %10 : vector<1x8x4xf32>
    %cst_11 = arith.constant dense<0.000000e+00> : vector<1x4xf32>
    %13 = vector.multi_reduction <add>, %12, %cst_11 [1] : vector<1x8x4xf32> to vector<1x4xf32>
    %14 = vector.shape_cast %13 : vector<1x4xf32> to vector<1x1x4xf32>
    %c0_12 = arith.constant 0 : index
    %c0_13 = arith.constant 0 : index
    %15 = memref.load %arg5[%c0_12, %c0_13] : memref<1x1xf32, #tpu.memory_space<smem>>
    %cst_14 = arith.constant 0.000000e+00 : f32
    %16 = vector.broadcast %cst_14 : f32 to vector<1x1x4xf32>
    %17 = arith.maximumf %14, %16 : vector<1x1x4xf32>
    %cst_15 = arith.constant 0.000000e+00 : f32
    %18 = vector.broadcast %cst_15 : f32 to vector<1x1x4xf32>
    %19 = arith.minimumf %14, %18 : vector<1x1x4xf32>
    %20 = vector.broadcast %15 : f32 to vector<1x1x4xf32>
    %21 = arith.mulf %20, %19 : vector<1x1x4xf32>
    %22 = arith.addf %17, %21 : vector<1x1x4xf32>
    %c0_16 = arith.constant 0 : index
    %c0_17 = arith.constant 0 : index
    %c0_18 = arith.constant 0 : index
    %23 = vector.load %arg6[%c0_16, %c0_17, %c0_18] : memref<3x8x4xf32, #tpu.memory_space<vmem>>, vector<1x8x4xf32>
    %24 = vector.shape_cast %23 : vector<1x8x4xf32> to vector<8x4xf32>
    %25 = vector.shape_cast %24 : vector<8x4xf32> to vector<1x8x4xf32>
    %26 = vector.broadcast %22 : vector<1x1x4xf32> to vector<1x8x4xf32>
    %27 = arith.mulf %25, %26 : vector<1x8x4xf32>
    %cst_19 = arith.constant dense<0.000000e+00> : vector<1x8xf32>
    %28 = vector.multi_reduction <add>, %27, %cst_19 [2] : vector<1x8x4xf32> to vector<1x8xf32>
    %29 = vector.shape_cast %28 : vector<1x8xf32> to vector<1x8x1xf32>
    %c1 = arith.constant 1 : index
    %c0_20 = arith.constant 0 : index
    %c0_21 = arith.constant 0 : index
    %30 = vector.load %arg6[%c1, %c0_20, %c0_21] : memref<3x8x4xf32, #tpu.memory_space<vmem>>, vector<1x8x4xf32>
    %31 = vector.shape_cast %30 : vector<1x8x4xf32> to vector<8x4xf32>
    %32 = vector.shape_cast %31 : vector<8x4xf32> to vector<1x8x4xf32>
    %33 = vector.broadcast %22 : vector<1x1x4xf32> to vector<1x8x4xf32>
    %34 = arith.mulf %32, %33 : vector<1x8x4xf32>
    %cst_22 = arith.constant dense<0.000000e+00> : vector<1x8xf32>
    %35 = vector.multi_reduction <add>, %34, %cst_22 [2] : vector<1x8x4xf32> to vector<1x8xf32>
    %36 = vector.shape_cast %35 : vector<1x8xf32> to vector<1x8x1xf32>
    %c2 = arith.constant 2 : index
    %c0_23 = arith.constant 0 : index
    %c0_24 = arith.constant 0 : index
    %37 = vector.load %arg6[%c2, %c0_23, %c0_24] : memref<3x8x4xf32, #tpu.memory_space<vmem>>, vector<1x8x4xf32>
    %38 = vector.shape_cast %37 : vector<1x8x4xf32> to vector<8x4xf32>
    %39 = vector.shape_cast %38 : vector<8x4xf32> to vector<1x8x4xf32>
    %40 = vector.broadcast %22 : vector<1x1x4xf32> to vector<1x8x4xf32>
    %41 = arith.mulf %39, %40 : vector<1x8x4xf32>
    %cst_25 = arith.constant dense<0.000000e+00> : vector<1x8xf32>
    %42 = vector.multi_reduction <add>, %41, %cst_25 [2] : vector<1x8x4xf32> to vector<1x8xf32>
    %43 = vector.shape_cast %42 : vector<1x8xf32> to vector<1x8x1xf32>
    %44 = arith.maximumf %29, %36 : vector<1x8x1xf32>
    %45 = arith.maximumf %44, %43 : vector<1x8x1xf32>
    %46 = arith.subf %29, %45 : vector<1x8x1xf32>
    %47 = math.exp %46 : vector<1x8x1xf32>
    %48 = arith.subf %36, %45 : vector<1x8x1xf32>
    %49 = math.exp %48 : vector<1x8x1xf32>
    %50 = arith.subf %43, %45 : vector<1x8x1xf32>
    %51 = math.exp %50 : vector<1x8x1xf32>
    %52 = arith.addf %47, %49 : vector<1x8x1xf32>
    %53 = arith.addf %52, %51 : vector<1x8x1xf32>
    %54 = tpu.reciprocal %53 : vector<1x8x1xf32> -> vector<1x8x1xf32>
    %c0_26 = arith.constant 0 : index
    %c0_27 = arith.constant 0 : index
    %c0_28 = arith.constant 0 : index
    %55 = vector.load %arg1[%c0_26, %c0_27, %c0_28] : memref<1x8x256xf32, #tpu.memory_space<vmem>>, vector<1x8x256xf32>
    %56 = arith.mulf %47, %54 : vector<1x8x1xf32>
    %57 = vector.broadcast %56 : vector<1x8x1xf32> to vector<1x8x256xf32>
    %58 = arith.mulf %55, %57 : vector<1x8x256xf32>
    %c0_29 = arith.constant 0 : index
    %c0_30 = arith.constant 0 : index
    %c0_31 = arith.constant 0 : index
    %59 = vector.load %arg2[%c0_29, %c0_30, %c0_31] : memref<1x8x256xf32, #tpu.memory_space<vmem>>, vector<1x8x256xf32>
    %60 = arith.mulf %49, %54 : vector<1x8x1xf32>
    %61 = vector.broadcast %60 : vector<1x8x1xf32> to vector<1x8x256xf32>
    %62 = arith.mulf %59, %61 : vector<1x8x256xf32>
    %63 = arith.addf %58, %62 : vector<1x8x256xf32>
    %c0_32 = arith.constant 0 : index
    %c0_33 = arith.constant 0 : index
    %c0_34 = arith.constant 0 : index
    %64 = vector.load %arg3[%c0_32, %c0_33, %c0_34] : memref<1x8x256xf32, #tpu.memory_space<vmem>>, vector<1x8x256xf32>
    %65 = arith.mulf %51, %54 : vector<1x8x1xf32>
    %66 = vector.broadcast %65 : vector<1x8x1xf32> to vector<1x8x256xf32>
    %67 = arith.mulf %64, %66 : vector<1x8x256xf32>
    %68 = arith.addf %63, %67 : vector<1x8x256xf32>
    %c0_35 = arith.constant 0 : index
    %c0_36 = arith.constant 0 : index
    %c0_37 = arith.constant 0 : index
    %69 = vector.load %arg7[%c0_35, %c0_36, %c0_37] : memref<1x8x256xf32, #tpu.memory_space<vmem>>, vector<1x8x256xf32>
    tpu.vector_store %arg7[%c0_35, %c0_36, %c0_37], %68 {strides = array<i32>} : memref<1x8x256xf32, #tpu.memory_space<vmem>>, vector<1x8x256xf32>,
    return
  }
  func.func @transform_0(%arg0: i32) -> (i32, i32, i32) {
    %c0_i32 = arith.constant 0 : i32
    %c0_i32_0 = arith.constant 0 : i32
    %c0_i32_1 = arith.constant 0 : i32
    return %arg0, %c0_i32, %c0_i32_0 : i32, i32, i32
  }
  func.func @transform_1(%arg0: i32) -> (i32, i32, i32) {
    %c0_i32 = arith.constant 0 : i32
    %c0_i32_0 = arith.constant 0 : i32
    %c0_i32_1 = arith.constant 0 : i32
    return %arg0, %c0_i32, %c0_i32_0 : i32, i32, i32
  }
  func.func @transform_2(%arg0: i32) -> (i32, i32, i32) {
    %c0_i32 = arith.constant 0 : i32
    %c0_i32_0 = arith.constant 0 : i32
    %c0_i32_1 = arith.constant 0 : i32
    return %arg0, %c0_i32, %c0_i32_0 : i32, i32, i32
  }
  func.func @transform_3(%arg0: i32) -> (i32, i32) {
    %c0_i32 = arith.constant 0 : i32
    %c0_i32_0 = arith.constant 0 : i32
    %c0_i32_1 = arith.constant 0 : i32
    return %c0_i32, %c0_i32_0 : i32, i32
  }
  func.func @transform_4(%arg0: i32) -> (i32, i32) {
    %c0_i32 = arith.constant 0 : i32
    %c0_i32_0 = arith.constant 0 : i32
    %c0_i32_1 = arith.constant 0 : i32
    return %c0_i32, %c0_i32_0 : i32, i32
  }
  func.func @transform_5(%arg0: i32) -> (i32, i32, i32) {
    %c0_i32 = arith.constant 0 : i32
    %c0_i32_0 = arith.constant 0 : i32
    %c0_i32_1 = arith.constant 0 : i32
    %c0_i32_2 = arith.constant 0 : i32
    return %c0_i32, %c0_i32_0, %c0_i32_1 : i32, i32, i32
  }
  func.func @transform_6(%arg0: i32) -> (i32, i32, i32) {
    %c0_i32 = arith.constant 0 : i32
    %c0_i32_0 = arith.constant 0 : i32
    %c0_i32_1 = arith.constant 0 : i32
    return %arg0, %c0_i32, %c0_i32_0 : i32, i32, i32
  }
}

</mosaic_0001>

<llo_original>
// kernel: tpu_custom_call.1
$region0: #{tpu_custom_call.1}
  #allocation0 [shape = 'u32[]', space=smem, size = 0x4, offset = 0x4, fixed_abs, tag = 'smem constant byte address 0x4 - core index']
  #allocation1 [shape = 'u32[144,128]{1,0:T(1,128)}', space=vmem, size = 0x12000, scoped, tag = 'internal scratch']
  #allocation2 [shape = 'f32[1,1]{1,0:T(1,128)S(6)}', space=smem, size = 0x200, scoped, tag = 'scoped memory for tpu_custom_call.1']
  %s0 = inlined_call_operand.vmem [shape: f32[2,8,256], index: 0, kind: input, shape index: {}]
  %s1 = inlined_call_operand.hbm [shape: f32[2,8,256], index: 1, kind: input, shape index: {}]
  %s2 = inlined_call_operand.hbm [shape: f32[2,8,256], index: 2, kind: input, shape index: {}]
  %s3 = inlined_call_operand.vmem [shape: f32[8,4], index: 3, kind: input, shape index: {}]
  %s4 = inlined_call_operand.<no memory space> [shape: f32[1,1], index: 4, kind: input, shape index: {}]
  %s5 = inlined_call_operand.vmem [shape: f32[3,8,4], index: 5, kind: input, shape index: {}]
  %s6 = inlined_call_operand.hbm [shape: f32[2,8,256], index: 6, kind: output, shape index: {}]
  %s7 = sld [smem:[#allocation0]]
  $region65: #{tpu_custom_call.1} parent=0
    _
  %s9 = ssub.s32 1, %s7
  %s10 = scalar_select 0, %s9, %s7
  %11 = sst [smem:[#allocation2]] %s4
  $region1: #{tpu_custom_call.1} parent=0
    #allocation3 [shape = 'u8[16384]{0}', space=vmem, size = 0x4000, scoped, tag = 'input window, operand 1']
    #allocation4 [shape = 's32[2]{0}', space=sflag, size = 0x8, scoped, tag = 'scoped memory for tpu_custom_call.1']
    #allocation5 [shape = 's32[2]{0}', space=sflag, size = 0x8, scoped, tag = 'scoped memory for tpu_custom_call.1']
    #allocation6 [shape = 'u8[16384]{0}', space=vmem, size = 0x4000, scoped, tag = 'input window, operand 2']
    #allocation7 [shape = 's32[2]{0}', space=sflag, size = 0x8, scoped, tag = 'scoped memory for tpu_custom_call.1']
    #allocation8 [shape = 'u8[16384]{0}', space=vmem, size = 0x4000, scoped, tag = 'output window, operand 0']
    %12 = vsyncpa [#allocation4], 0
    %s13 = scalar_lea.sflag [#allocation4], 1
    %14 = vsyncpa %s13, 0
    %15 = vsyncpa [#allocation7], 0
    %s16 = scalar_lea.sflag [#allocation7], 1
    %17 = vsyncpa %s16, 0
    %18 = vsyncpa [#allocation5], 0
    %s19 = scalar_lea.sflag [#allocation5], 1
    %20 = vsyncpa %s19, 0
    loop: start=0, step=1, limit=4
    $region2: #{tpu_custom_call.1} parent=1 // loop_pre_header
      _
    $region3: #{tpu_custom_call.1} parent=1 // loop_header
      %s22 = sphi 0, %s26
      %p23 = scmp.ge.s32.totalorder %s22, 4
      %s32 = sphi 0, %s34
      %s35 = sphi 0, %s32
      %s36 = sphi 0, %s35
      %s52 = sphi 0, %s36
      %s58 = sphi 0, %s60
      %s61 = sphi 0, %s58
      %s62 = sphi 0, %s61
      %s78 = sphi 0, %s62
      %s84 = sphi 0, %s86
      %s87 = sphi 0, %s84
      %s88 = sphi 0, %s87
      %s104 = sphi 0, %s88
      %s108 = sphi 0, %s108
      %s110 = sphi 0, %s108
      %s111 = sphi 0, %s110
      %s125 = sphi 0, %s111
      %s129 = sphi 0, %s129
      %s131 = sphi 0, %s129
      %s132 = sphi 0, %s131
      %s146 = sphi 0, %s132
      %s150 = sphi 0, %s150
      %s152 = sphi 0, %s150
      %s153 = sphi 0, %s152
      %s167 = sphi 0, %s153
      %s173 = sphi 0, %s175
      %s176 = sphi 0, %s173
      %s177 = sphi 0, %s176
      %s193 = sphi 0, %s177
    $region4: #{tpu_custom_call.1} parent=1 // loop_header_branch
      %25 = sbr.rel (%p23) target = $region8
    $region5: #{tpu_custom_call.1} parent=1 // loop_body
      %s27 = ssub.s32 %s22, 1
      %s28 = ssub.s32 %s22, 2
      %s29 = sadd.s32 %s22, 1
      %s30 = ssub.s32 %s22, %s29
      %p31 = scmp.eq.s32.totalorder %s30, 0
      %s33 = sadd.s32 %s32, 1
      %s34 = scalar_select %p31, %s32, %s33
      %p37 = pneg %p31
      %p38 = scmp.eq.s32.totalorder %s22, 1
      %p39 = por %p37, %p38
      %p40 = scmp.ne.s32.totalorder %s32, %s35
      %p41 = scmp.eq.s32.totalorder %s22, 0
      %p42 = por %p40, %p41
      %p43 = scmp.ne.s32.totalorder %s32, %s35
      %p44 = scmp.eq.s32.totalorder %s27, 1
      %p45 = por %p43, %p44
      %p46 = scmp.ne.s32.totalorder %s35, %s36
      %p47 = scmp.eq.s32.totalorder %s27, 0
      %p48 = por %p46, %p47
      %p49 = scmp.ne.s32.totalorder %s35, %s36
      %p50 = scmp.eq.s32.totalorder %s28, 1
      %p51 = por %p49, %p50
      %p53 = scmp.ne.s32.totalorder %s36, %s52
      %p54 = scmp.eq.s32.totalorder %s28, 0
      %p55 = por %p53, %p54
      %s56 = ssub.s32 %s22, %s29
      %p57 = scmp.eq.s32.totalorder %s56, 0
      %s59 = sadd.s32 %s58, 1
      %s60 = scalar_select %p57, %s58, %s59
      %p63 = pneg %p57
      %p64 = scmp.eq.s32.totalorder %s22, 1
      %p65 = por %p63, %p64
      %p66 = scmp.ne.s32.totalorder %s58, %s61
      %p67 = scmp.eq.s32.totalorder %s22, 0
      %p68 = por %p66, %p67
      %p69 = scmp.ne.s32.totalorder %s58, %s61
      %p70 = scmp.eq.s32.totalorder %s27, 1
      %p71 = por %p69, %p70
      %p72 = scmp.ne.s32.totalorder %s61, %s62
      %p73 = scmp.eq.s32.totalorder %s27, 0
      %p74 = por %p72, %p73
      %p75 = scmp.ne.s32.totalorder %s61, %s62
      %p76 = scmp.eq.s32.totalorder %s28, 1
      %p77 = por %p75, %p76
      %p79 = scmp.ne.s32.totalorder %s62, %s78
      %p80 = scmp.eq.s32.totalorder %s28, 0
      %p81 = por %p79, %p80
      %s82 = ssub.s32 %s22, %s29
      %p83 = scmp.eq.s32.totalorder %s82, 0
      %s85 = sadd.s32 %s84, 1
      %s86 = scalar_select %p83, %s84, %s85
      %p89 = pneg %p83
      %p90 = scmp.eq.s32.totalorder %s22, 1
      %p91 = por %p89, %p90
      %p92 = scmp.ne.s32.totalorder %s84, %s87
      %p93 = scmp.eq.s32.totalorder %s22, 0
      %p94 = por %p92, %p93
      %p95 = scmp.ne.s32.totalorder %s84, %s87
      %p96 = scmp.eq.s32.totalorder %s27, 1
      %p97 = por %p95, %p96
      %p98 = scmp.ne.s32.totalorder %s87, %s88
      %p99 = scmp.eq.s32.totalorder %s27, 0
      %p100 = por %p98, %p99
      %p101 = scmp.ne.s32.totalorder %s87, %s88
      %p102 = scmp.eq.s32.totalorder %s28, 1
      %p103 = por %p101, %p102
      %p105 = scmp.ne.s32.totalorder %s88, %s104
      %p106 = scmp.eq.s32.totalorder %s28, 0
      %p107 = por %p105, %p106
      %s109 = sadd.s32 %s108, 1
      %p112 = scmp.eq.s32.totalorder %s22, 1
      %p113 = scmp.ne.s32.totalorder %s108, %s110
      %p114 = scmp.eq.s32.totalorder %s22, 0
      %p115 = por %p113, %p114
      %p116 = scmp.ne.s32.totalorder %s108, %s110
      %p117 = scmp.eq.s32.totalorder %s27, 1
      %p118 = por %p116, %p117
      %p119 = scmp.ne.s32.totalorder %s110, %s111
      %p120 = scmp.eq.s32.totalorder %s27, 0
      %p121 = por %p119, %p120
      %p122 = scmp.ne.s32.totalorder %s110, %s111
      %p123 = scmp.eq.s32.totalorder %s28, 1
      %p124 = por %p122, %p123
      %p126 = scmp.ne.s32.totalorder %s111, %s125
      %p127 = scmp.eq.s32.totalorder %s28, 0
      %p128 = por %p126, %p127
      %s130 = sadd.s32 %s129, 1
      %p133 = scmp.eq.s32.totalorder %s22, 1
      %p134 = scmp.ne.s32.totalorder %s129, %s131
      %p135 = scmp.eq.s32.totalorder %s22, 0
      %p136 = por %p134, %p135
      %p137 = scmp.ne.s32.totalorder %s129, %s131
      %p138 = scmp.eq.s32.totalorder %s27, 1
      %p139 = por %p137, %p138
      %p140 = scmp.ne.s32.totalorder %s131, %s132
      %p141 = scmp.eq.s32.totalorder %s27, 0
      %p142 = por %p140, %p141
      %p143 = scmp.ne.s32.totalorder %s131, %s132
      %p144 = scmp.eq.s32.totalorder %s28, 1
      %p145 = por %p143, %p144
      %p147 = scmp.ne.s32.totalorder %s132, %s146
      %p148 = scmp.eq.s32.totalorder %s28, 0
      %p149 = por %p147, %p148
      %s151 = sadd.s32 %s150, 1
      %p154 = scmp.eq.s32.totalorder %s22, 1
      %p155 = scmp.ne.s32.totalorder %s150, %s152
      %p156 = scmp.eq.s32.totalorder %s22, 0
      %p157 = por %p155, %p156
      %p158 = scmp.ne.s32.totalorder %s150, %s152
      %p159 = scmp.eq.s32.totalorder %s27, 1
      %p160 = por %p158, %p159
      %p161 = scmp.ne.s32.totalorder %s152, %s153
      %p162 = scmp.eq.s32.totalorder %s27, 0
      %p163 = por %p161, %p162
      %p164 = scmp.ne.s32.totalorder %s152, %s153
      %p165 = scmp.eq.s32.totalorder %s28, 1
      %p166 = por %p164, %p165
      %p168 = scmp.ne.s32.totalorder %s153, %s167
      %p169 = scmp.eq.s32.totalorder %s28, 0
      %p170 = por %p168, %p169
      %s171 = ssub.s32 %s22, %s29
      %p172 = scmp.eq.s32.totalorder %s171, 0
      %s174 = sadd.s32 %s173, 1
      %s175 = scalar_select %p172, %s173, %s174
      %p178 = pneg %p172
      %p179 = scmp.eq.s32.totalorder %s22, 1
      %p180 = por %p178, %p179
      %p181 = scmp.ne.s32.totalorder %s173, %s176
      %p182 = scmp.eq.s32.totalorder %s22, 0
      %p183 = por %p181, %p182
      %p184 = scmp.ne.s32.totalorder %s173, %s176
      %p185 = scmp.eq.s32.totalorder %s27, 1
      %p186 = por %p184, %p185
      %p187 = scmp.ne.s32.totalorder %s176, %s177
      %p188 = scmp.eq.s32.totalorder %s27, 0
      %p189 = por %p187, %p188
      %p190 = scmp.ne.s32.totalorder %s176, %s177
      %p191 = scmp.eq.s32.totalorder %s28, 1
      %p192 = por %p190, %p191
      %p194 = scmp.ne.s32.totalorder %s177, %s193
      %p195 = scmp.eq.s32.totalorder %s28, 0
      %p196 = por %p194, %p195
      %p197 = scmp.le.s32.totalorder 1, %s22
      %p198 = scmp.lt.s32.totalorder %s22, 3
      %p199 = pnand %p197, %p198
      %p200 = pneg %p199
      // Predicated region
      $region9: #{tpu_custom_call.1} parent=5 // pred_check
        _
      $region10: #{tpu_custom_call.1} parent=5 // pred_check_branch
        %202 = sbr.rel (%p199) target = $region12
      $region11: #{tpu_custom_call.1} parent=5 // pred_region
        %s203 = ssub.s32 %s22, 1
        // Predicated region
        $region13: #{tpu_custom_call.1} parent=11 // pred_check
          %p204 = pneg %p121
        $region14: #{tpu_custom_call.1} parent=11 // pred_check_branch
          %206 = sbr.rel (%p204) target = $region16
        $region15: #{tpu_custom_call.1} parent=11 // pred_region
          _
        $region16: #{tpu_custom_call.1} parent=11 // pred_fallthru
          _
        // Predicated region
        $region17: #{tpu_custom_call.1} parent=11 // pred_check
          %p207 = pneg %p142
        $region18: #{tpu_custom_call.1} parent=11 // pred_check_branch
          %209 = sbr.rel (%p207) target = $region20
        $region19: #{tpu_custom_call.1} parent=11 // pred_region
          _
        $region20: #{tpu_custom_call.1} parent=11 // pred_fallthru
          _
        // Predicated region
        $region21: #{tpu_custom_call.1} parent=11 // pred_check
          %p210 = pneg %p163
        $region22: #{tpu_custom_call.1} parent=11 // pred_check_branch
          %212 = sbr.rel (%p210) target = $region24
        $region23: #{tpu_custom_call.1} parent=11 // pred_region
          _
        $region24: #{tpu_custom_call.1} parent=11 // pred_fallthru
          _
      $region12: #{tpu_custom_call.1} parent=5 // pred_fallthru
        _
      %p213 = scmp.lt.s32.totalorder %s22, 2
      // Predicated region
      $region25: #{tpu_custom_call.1} parent=5 // pred_check
        %p214 = pneg %p213
      $region26: #{tpu_custom_call.1} parent=5 // pred_check_branch
        %216 = sbr.rel (%p214) target = $region28
      $region27: #{tpu_custom_call.1} parent=5 // pred_region
        // Predicated region
        $region29: #{tpu_custom_call.1} parent=27 // pred_check
          %p217 = pneg %p42
        $region30: #{tpu_custom_call.1} parent=27 // pred_check_branch
          %219 = sbr.rel (%p217) target = $region32
        $region31: #{tpu_custom_call.1} parent=27 // pred_region
          %p220 = scmp.lt.s32.totalorder %s22, 1
          %s221 = scalar_select %p220, %s22, 1
          %s222 = smul.addr %s221, 2
          %s223 = smul.addr %s222, 8
          %s224 = scalar_lea.vmem %s0, %s223
        $region32: #{tpu_custom_call.1} parent=27 // pred_fallthru
          _
        // Predicated region
        $region33: #{tpu_custom_call.1} parent=27 // pred_check
          %p225 = pneg %p68
        $region34: #{tpu_custom_call.1} parent=27 // pred_check_branch
          %227 = sbr.rel (%p225) target = $region36
        $region35: #{tpu_custom_call.1} parent=27 // pred_region
          %s228 = sand.u32 %s58, 1
          %s229 = scalar_lea.sflag [#allocation4], %s228
          %s230 = sand.u32 %s58, 1
          %s231 = smul.addr %s230, 16
          %s232 = scalar_lea.vmem [#allocation3], %s231
          %s234 = ssub.s32 256, 256
          %235 = vsyncadd %s229, %s234
          %s236 = smul.addr %s22, 2
          %s237 = smul.addr %s236, 128
          %s238 = scalar_lea.hbm %s1, %s237
          %s240 = sshll.u32 %s232, 4
          %s241 = int_to_ptr.vmem [resolvable:$true] %s240
          %243 = dma.hbm_to_vmem [thread:$0]  %s238, 256, %s241, %s229
        $region36: #{tpu_custom_call.1} parent=27 // pred_fallthru
          _
        // Predicated region
        $region37: #{tpu_custom_call.1} parent=27 // pred_check
          %p244 = pneg %p94
        $region38: #{tpu_custom_call.1} parent=27 // pred_check_branch
          %246 = sbr.rel (%p244) target = $region40
        $region39: #{tpu_custom_call.1} parent=27 // pred_region
          %s247 = sand.u32 %s84, 1
          %s248 = scalar_lea.sflag [#allocation7], %s247
          %s249 = sand.u32 %s84, 1
          %s250 = smul.addr %s249, 16
          %s251 = scalar_lea.vmem [#allocation6], %s250
          %s253 = ssub.s32 256, 256
          %254 = vsyncadd %s248, %s253
          %s255 = smul.addr %s22, 2
          %s256 = smul.addr %s255, 128
          %s257 = scalar_lea.hbm %s2, %s256
          %s259 = sshll.u32 %s251, 4
          %s260 = int_to_ptr.vmem [resolvable:$true] %s259
          %262 = dma.hbm_to_vmem [thread:$0]  %s257, 256, %s260, %s248
        $region40: #{tpu_custom_call.1} parent=27 // pred_fallthru
          _
      $region28: #{tpu_custom_call.1} parent=5 // pred_fallthru
        _
      %p263 = scmp.le.s32.totalorder 1, %s22
      %p264 = scmp.lt.s32.totalorder %s22, 3
      %p265 = pnand %p263, %p264
      %p266 = pneg %p265
      // Predicated region
      $region41: #{tpu_custom_call.1} parent=5 // pred_check
        _
      $region42: #{tpu_custom_call.1} parent=5 // pred_check_branch
        %268 = sbr.rel (%p265) target = $region44
      $region43: #{tpu_custom_call.1} parent=5 // pred_region
        %s269 = ssub.s32 %s22, 1
        %s270 = sand.u32 %s61, 1
        %s271 = scalar_lea.sflag [#allocation4], %s270
        %s272 = sand.u32 %s61, 1
        %s273 = smul.addr %s272, 16
        %s274 = scalar_lea.vmem [#allocation3], %s273
        // Predicated region
        $region45: #{tpu_custom_call.1} parent=43 // pred_check
          %p275 = pneg %p74
        $region46: #{tpu_custom_call.1} parent=43 // pred_check_branch
          %277 = sbr.rel (%p275) target = $region48
        $region47: #{tpu_custom_call.1} parent=43 // pred_region
          %278 = dma.done %s271, 256
        $region48: #{tpu_custom_call.1} parent=43 // pred_fallthru
          _
        %s279 = sand.u32 %s87, 1
        %s280 = scalar_lea.sflag [#allocation7], %s279
        %s281 = sand.u32 %s87, 1
        %s282 = smul.addr %s281, 16
        %s283 = scalar_lea.vmem [#allocation6], %s282
        // Predicated region
        $region49: #{tpu_custom_call.1} parent=43 // pred_check
          %p284 = pneg %p100
        $region50: #{tpu_custom_call.1} parent=43 // pred_check_branch
          %286 = sbr.rel (%p284) target = $region52
        $region51: #{tpu_custom_call.1} parent=43 // pred_region
          %287 = dma.done %s280, 256
        $region52: #{tpu_custom_call.1} parent=43 // pred_fallthru
          _
        %p288 = scmp.lt.s32.totalorder %s27, 1
        %s289 = scalar_select %p288, %s27, 1
        %s290 = smul.addr %s289, 2
        %s291 = smul.addr %s290, 8
        %s292 = scalar_lea.vmem %s0, %s291
        %p293 = pneg %p48
        %p294 = pneg %p45
        %s295 = sand.u32 %s61, 1
        %s296 = scalar_lea.sflag [#allocation4], %s295
        %s297 = sand.u32 %s61, 1
        %s298 = smul.addr %s297, 16
        %s299 = scalar_lea.vmem [#allocation3], %s298
        %p300 = pneg %p74
        %p301 = pneg %p71
        %s302 = sand.u32 %s87, 1
        %s303 = scalar_lea.sflag [#allocation7], %s302
        %s304 = sand.u32 %s87, 1
        %s305 = smul.addr %s304, 16
        %s306 = scalar_lea.vmem [#allocation6], %s305
        %p307 = pneg %p100
        %p308 = pneg %p97
        %p309 = pneg %p121
        %p310 = pneg %p118
        %p311 = pneg %p142
        %p312 = pneg %p139
        %p313 = pneg %p163
        %p314 = pneg %p160
        %p315 = pneg %p189
        %p316 = pneg %p186
        %s317 = sand.u32 %s176, 1
        %s318 = scalar_lea.sflag [#allocation5], %s317
        %s319 = sand.u32 %s176, 1
        %s320 = smul.addr %s319, 16
        %s321 = scalar_lea.vmem [#allocation8], %s320
        %p322 = scmp.lt.s32.totalorder %s27, 1
        %s323 = scalar_select %p322, %s27, 1
        %s324 = smul.addr %s323, 2
        %s325 = smul.addr %s324, 8
        %s326 = scalar_lea.vmem %s0, %s325
        %v327 = vld [vmem:[%s326] sm:$0xff]
        %v328 = vld [vmem:[%s326 + $0x8] sm:$0xff]
        %v329 = vld [vmem:[%s274] sm:$0xff]
        %v330 = vld [vmem:[%s274 + $0x8] sm:$0xff]
        %v331 = vadd.f32 %v327, %v329
        %v332 = vadd.f32 %v328, %v330
        %v333 = vld [vmem:[%s283] sm:$0xff]
        %v334 = vld [vmem:[%s283 + $0x8] sm:$0xff]
        %v335 = vadd.f32 %v331, %v333
        %v336 = vadd.f32 %v332, %v334
        %v337 = vadd.f32 %v335, %v336
        %338 = vadd.xlane.f32.xlu0 %v337
        %v339 = vpop.xlane.xlu0 %338
        %v340 = vmul.f32 %v339, 0.00390625
        %v341 = vld [vmem:[%s3] sm:$0xff]
        %v342 = vmul.f32 %v340, %v341
        %vm343 = vcmask 31744
        %v344 = vsel %vm343, %v342, 0.0
        %v345 = vrot.slane %v344, 4
        %v346 = vadd.f32 %v344, %v345
        %v347 = vrot.slane %v346, 2
        %v348 = vadd.f32 %v346, %v347
        %v349 = vrot.slane %v348, 1
        %v350 = vadd.f32 %v348, %v349
        %s351 = sld [smem:[#allocation2]]
        %v352 = vmax.f32 %v350, 0.0
        %v353 = vmin.f32 %v350, 0.0
        %v354 = vstv %s351
        %v355 = vmul.f32 %v354, %v353
        %v356 = vadd.f32 %v352, %v355
        %v357 = vld [vmem:[%s5] sm:$0xff]
        %v358 = vmul.f32 %v357, %v356
        %v359 = vsel %vm343, %v358, 0.0
        %360 = vadd.xlane.f32.xlu0 %v359
        %v361 = vpop.xlane.xlu0 %360
        %s362 = scalar_lea.vmem %s5, 8
        %v363 = vld [vmem:[%s362] sm:$0xff]
        %v364 = vmul.f32 %v363, %v356
        %v365 = vsel %vm343, %v364, 0.0
        %366 = vadd.xlane.f32.xlu0 %v365
        %v367 = vpop.xlane.xlu0 %366
        %s368 = scalar_lea.vmem %s5, 16
        %v369 = vld [vmem:[%s368] sm:$0xff]
        %v370 = vmul.f32 %v369, %v356
        %v371 = vsel %vm343, %v370, 0.0
        %372 = vadd.xlane.f32.xlu0 %v371
        %v373 = vpop.xlane.xlu0 %372
        %v374 = vmax.f32 %v361, %v367
        %v375 = vmax.f32 %v374, %v373
        %v376 = vsub.f32 %v361, %v375
        %v377 = vmul.f32 %v376, 1.442695
        %v378 = vpow.pop %v377
        %v379 = vsub.f32 %v367, %v375
        %v380 = vmul.f32 %v379, 1.442695
        %v381 = vpow.pop %v380
        %v382 = vsub.f32 %v373, %v375
        %v383 = vmul.f32 %v382, 1.442695
        %v384 = vpow.pop %v383
        %v385 = vadd.f32 %v378, %v381
        %v386 = vadd.f32 %v385, %v384
        %v387 = vrcp.pop %v386
        %v388 = vmul.f32 %v378, %v387
        %v389 = vmul.f32 %v327, %v388
        %v390 = vmul.f32 %v328, %v388
        %v391 = vmul.f32 %v381, %v387
        %v392 = vmul.f32 %v329, %v391
        %v393 = vmul.f32 %v330, %v391
        %v394 = vadd.f32 %v389, %v392
        %v395 = vadd.f32 %v390, %v393
        %v396 = vmul.f32 %v384, %v387
        %v397 = vmul.f32 %v333, %v396
        %v398 = vmul.f32 %v334, %v396
        %v399 = vadd.f32 %v394, %v397
        %v400 = vadd.f32 %v395, %v398
        %401 = vst [vmem:[%s321] sm:$0xff] %v399
        %402 = vst [vmem:[%s321 + $0x8] sm:$0xff] %v400
        %s403 = sand.u32 %s176, 1
        %s404 = scalar_lea.sflag [#allocation5], %s403
        %s405 = sand.u32 %s176, 1
        %s406 = smul.addr %s405, 16
        %s407 = scalar_lea.vmem [#allocation8], %s406
        // Predicated region
        $region53: #{tpu_custom_call.1} parent=43 // pred_check
          %p408 = pneg %p186
        $region54: #{tpu_custom_call.1} parent=43 // pred_check_branch
          %410 = sbr.rel (%p408) target = $region56
        $region55: #{tpu_custom_call.1} parent=43 // pred_region
          %s412 = ssub.s32 256, 256
          %413 = vsyncadd %s404, %s412
          %s414 = smul.addr %s27, 2
          %s415 = smul.addr %s414, 128
          %s416 = scalar_lea.hbm %s6, %s415
          %s418 = sshll.u32 %s407, 4
          %s419 = int_to_ptr.vmem [resolvable:$true] %s418
          %421 = dma.vmem_to_hbm [thread:$0]  %s419, 256, %s416, %s404
        $region56: #{tpu_custom_call.1} parent=43 // pred_fallthru
          _
      $region44: #{tpu_custom_call.1} parent=5 // pred_fallthru
        _
      %p422 = scmp.le.s32.totalorder 2, %s22
      // Predicated region
      $region57: #{tpu_custom_call.1} parent=5 // pred_check
        %p423 = pneg %p422
      $region58: #{tpu_custom_call.1} parent=5 // pred_check_branch
        %425 = sbr.rel (%p423) target = $region60
      $region59: #{tpu_custom_call.1} parent=5 // pred_region
        %s426 = ssub.s32 %s22, 2
        // Predicated region
        $region61: #{tpu_custom_call.1} parent=59 // pred_check
          %p427 = pneg %p192
        $region62: #{tpu_custom_call.1} parent=59 // pred_check_branch
          %429 = sbr.rel (%p427) target = $region64
        $region63: #{tpu_custom_call.1} parent=59 // pred_region
          %s430 = sand.u32 %s177, 1
          %s431 = scalar_lea.sflag [#allocation5], %s430
          %s432 = sand.u32 %s177, 1
          %s433 = smul.addr %s432, 16
          %s434 = scalar_lea.vmem [#allocation8], %s433
          %435 = dma.done %s431, 256
        $region64: #{tpu_custom_call.1} parent=59 // pred_fallthru
          _
      $region60: #{tpu_custom_call.1} parent=5 // pred_fallthru
        _
    $region6: #{tpu_custom_call.1} parent=1 // loop_footer
      %s26 = sadd.s32 1, %s22
    $region7: #{tpu_custom_call.1} parent=1 // loop_footer_branch
      %21 = sbr.rel target = $region3
    $region8: #{tpu_custom_call.1} parent=1 // loop_exit
      _
    %436 = vsyncpa [#allocation4], 1
    %s437 = scalar_lea.sflag [#allocation4], 1
    %438 = vsyncpa %s437, 1
    %439 = vsyncpa [#allocation7], 1
    %s440 = scalar_lea.sflag [#allocation7], 1
    %441 = vsyncpa %s440, 1
    %442 = vsyncpa [#allocation5], 1
    %s443 = scalar_lea.sflag [#allocation5], 1
    %444 = vsyncpa %s443, 1

</llo_original>
